<compile_context>
chip_gen: v6e
topology: v6e:2x2x1
jax: 0.10.0
libtpu: 0.0.40
codegen_flags: <defaults>
</compile_context>

<pallas_src>
import jax
import jax.numpy as jnp
from jax.experimental import pallas as pl
from jax.experimental.pallas import tpu as pltpu

_LANES = 128
_SUBLANES = 8
_SINGLE_INVOCATION_BYTES = 512 * 1024  # below this, one full-extent block


def _swish_kernel(x_ref, o_ref):
    x = x_ref[...].astype(jnp.float32)
    o_ref[...] = (x * jax.nn.sigmoid(x)).astype(o_ref.dtype)


def _round_up(a, b):
    return ((a + b - 1) // b) * b


def _pick_width(n):
    """Widest lane-dense last dim (multiple of 128) that divides n exactly."""
    for w in (4096, 2048, 1024, 512, 256, 128):
        if n % w == 0:
            return w
    return None


def _tile_bytes_target():
    # v7x has only 64 MiB physical VMEM -> smaller tiles; v5e/v6e (128 MiB)
    # comfortably take ~4 MiB tiles (double-buffered in+out = 4x tile).
    try:
        cap = pltpu.get_tpu_info().vmem_capacity_bytes
    except Exception:
        cap = 128 * 1024 * 1024
    return (2 << 20) if cap < (100 << 20) else (4 << 20)


def swish(x):
    """Elementwise x * sigmoid(x) for any shape/dtype."""
    orig_shape = x.shape
    dtype = x.dtype
    n = x.size
    itemsize = jnp.dtype(dtype).itemsize

    flat = x.reshape(-1)

    width = _pick_width(n)
    padded = False
    if width is None:
        # Rare ragged case: pad by <128 elems. swish(0)=0, so zeros are safe.
        width = _LANES
        n_pad = _round_up(n, width)
        flat = jnp.pad(flat, (0, n_pad - n))
        padded = True
    else:
        n_pad = n

    rows = n_pad // width
    x2d = flat.reshape(rows, width)
    total_bytes = rows * width * itemsize

    if total_bytes <= _SINGLE_INVOCATION_BYTES or rows <= _SUBLANES:
        # Small input: single invocation, full-extent block (no per-step cost).
        block_rows = rows
        grid = (1,)
    else:
        tile_target = _tile_bytes_target()
        target_rows = max(
            _SUBLANES,
            (tile_target // (width * itemsize)) // _SUBLANES * _SUBLANES,
        )
        # Cap the block so there are >=2 grid steps (lets v7x use both TCs).
        half_rows = _round_up(pl.cdiv(rows, 2), _SUBLANES)
        block_rows = max(_SUBLANES, min(target_rows, half_rows))
        grid = (pl.cdiv(rows, block_rows),)

    block_bytes = block_rows * width * itemsize
    # Double-buffered input + output = 4x tile; floor at 32 MiB (safe on all
    # chips, physical VMEM >= 64 MiB) so the pipeline can actually double-buffer.
    vmem_limit = max(32 << 20, int(6 * block_bytes))

    out = pl.pallas_call(
        _swish_kernel,
        out_shape=jax.ShapeDtypeStruct((rows, width), dtype),
        grid=grid,
        in_specs=[pl.BlockSpec((block_rows, width), lambda i: (i, 0))],
        out_specs=pl.BlockSpec((block_rows, width), lambda i: (i, 0)),
        compiler_params=pltpu.CompilerParams(
            dimension_semantics=("parallel",),
            vmem_limit_bytes=vmem_limit,
        ),
    )(x2d)

    out_flat = out.reshape(-1)
    if padded:
        out_flat = out_flat[:n]
    return out_flat.reshape(orig_shape)


swish_jit = jax.jit(swish)


if __name__ == "__main__":
    # Small shapes consistent with the module: (batch, block_size, embeddings_dims)
    BATCH, BLOCK_SIZE, EMB = 2, 16, 48
    key = jax.random.PRNGKey(0)
    x = jax.random.normal(key, (BATCH, BLOCK_SIZE, EMB), jnp.float32)

    out = swish_jit(x)
    out = jax.block_until_ready(out)

    ref = x * jax.nn.sigmoid(x)
    assert out.shape == x.shape
    assert bool(jnp.all(jnp.isfinite(out)))
    max_err = float(jnp.max(jnp.abs(out - ref)))
    assert bool(jnp.allclose(out, ref, rtol=1e-5, atol=1e-5)), max_err

    # Also exercise a larger, multi-tile shape (hits the tiled/pipelined path).
    x_big = jax.random.normal(jax.random.PRNGKey(1), (8, 1024, 1024), jnp.float32)
    out_big = jax.block_until_ready(swish_jit(x_big))
    ref_big = x_big * jax.nn.sigmoid(x_big)
    assert bool(jnp.allclose(out_big, ref_big, rtol=1e-5, atol=1e-5))

    print("KERNEL_OK")
</pallas_src>

<mosaic_0001>
module attributes {stable_mosaic.version = 11 : i64} {
  func.func @_swish_kernel(%arg0: i32, %arg1: memref<3x512xf32, #tpu.memory_space<vmem>>, %arg2: memref<3x512xf32, #tpu.memory_space<vmem>>) attributes {dimension_semantics = [#tpu.dimension_semantics<parallel>], iteration_bounds = array<i64: 1>, scalar_prefetch = 0 : i64, scratch_operands = 0 : i64, tpu.core_type = #tpu.core_type<tc>, window_params = [{transform_indices = @transform_0, window_bounds = array<i64: 3, 512>}, {transform_indices = @transform_1, window_bounds = array<i64: 3, 512>}]} {
    %c0 = arith.constant 0 : index
    %c0_0 = arith.constant 0 : index
    %0 = vector.load %arg1[%c0, %c0_0] : memref<3x512xf32, #tpu.memory_space<vmem>>, vector<3x512xf32>
    %1 = arith.negf %0 : vector<3x512xf32>
    %2 = math.exp %1 : vector<3x512xf32>
    %cst = arith.constant 1.000000e+00 : f32
    %3 = vector.broadcast %cst : f32 to vector<3x512xf32>
    %4 = arith.addf %3, %2 : vector<3x512xf32>
    %5 = arith.divf %3, %4 : vector<3x512xf32>
    %6 = arith.mulf %0, %5 : vector<3x512xf32>
    %c0_1 = arith.constant 0 : index
    %c0_2 = arith.constant 0 : index
    %7 = vector.load %arg2[%c0_1, %c0_2] : memref<3x512xf32, #tpu.memory_space<vmem>>, vector<3x512xf32>
    tpu.vector_store %arg2[%c0_1, %c0_2], %6 {strides = array<i32>} : memref<3x512xf32, #tpu.memory_space<vmem>>, vector<3x512xf32>,
    return
  }
  func.func @transform_0(%arg0: i32) -> (i32, i32) {
    %c0_i32 = arith.constant 0 : i32
    %c0_i32_0 = arith.constant 0 : i32
    return %arg0, %c0_i32 : i32, i32
  }
  func.func @transform_1(%arg0: i32) -> (i32, i32) {
    %c0_i32 = arith.constant 0 : i32
    %c0_i32_0 = arith.constant 0 : i32
    return %arg0, %c0_i32 : i32, i32
  }
}

</mosaic_0001>

<llo_original>
// kernel: swish.1
$region0: #{swish.1}
  #allocation0 [shape = 'u32[]', space=smem, size = 0x4, offset = 0x4, fixed_abs, tag = 'smem constant byte address 0x4 - core index']
  #allocation1 [shape = 'u32[144,128]{1,0:T(1,128)}', space=vmem, size = 0x12000, scoped, tag = 'internal scratch']
  %s0 = inlined_call_operand.vmem [shape: f32[3,512], index: 0, kind: input, shape index: {}]
  %s1 = inlined_call_operand.vmem [shape: f32[3,512], index: 1, kind: output, shape index: {}]
  %s2 = sld [smem:[#allocation0]]
  $region14: #{swish.1} parent=0
    _
  %s4 = ssub.s32 1, %s2
  %s5 = scalar_select 0, %s4, %s2
  // Predicated region
  $region2: #{swish.1} parent=0 // pred_check
    _
  $region3: #{swish.1} parent=0 // pred_check_branch
    %7 = sbr.rel (0) target = $region5
  $region4: #{swish.1} parent=0 // pred_region
    _
  $region5: #{swish.1} parent=0 // pred_fallthru
    _
  %v8 = vld [vmem:[%s0] sm:$0x77]
  %v9 = vld [vmem:[%s0 + $0x8] sm:$0x77]
  %v10 = vxor.u32 %v8, 2147483648
  %v11 = vxor.u32 %v9, 2147483648
  %v12 = vmul.f32 %v10, 1.442695
  %v13 = vpow.pop %v12
  %v14 = vmul.f32 %v11, 1.442695
  %v15 = vpow.pop %v14
  %v16 = vadd.f32 %v13, 1.0
  %v17 = vadd.f32 %v15, 1.0
  %v18 = vrcp.pop %v16
  %v19 = vmul.f32 1.0, %v18
  %v20 = vrcp.pop %v17
  %v21 = vmul.f32 1.0, %v20
  %v22 = vmul.f32 %v8, %v19
  %v23 = vmul.f32 %v9, %v21
  %24 = vst [vmem:[%s1] sm:$0x77] %v22
  %25 = vst [vmem:[%s1 + $0x8] sm:$0x77] %v23
  // Predicated region
  $region6: #{swish.1} parent=0 // pred_check
    _
  $region7: #{swish.1} parent=0 // pred_check_branch
    %27 = sbr.rel (0) target = $region9
  $region8: #{swish.1} parent=0 // pred_region
    _
  $region9: #{swish.1} parent=0 // pred_fallthru
    _
  // Predicated region
  $region10: #{swish.1} parent=0 // pred_check
    _
  $region11: #{swish.1} parent=0 // pred_check_branch
    %29 = sbr.rel (0) target = $region13
  $region12: #{swish.1} parent=0 // pred_region
    _
  $region13: #{swish.1} parent=0 // pred_fallthru
    _

</llo_original>
